<compile_context>
chip_gen: v7x
topology: tpu7x:2x2x1
jax: 0.10.0
libtpu: 0.0.40
codegen_flags: <defaults>
</compile_context>

<pallas_src>
import functools

import jax
import jax.numpy as jnp
from jax import lax
from jax.experimental import pallas as pl
from jax.experimental.pallas import tpu as pltpu


_INV_SQRT2 = 0.7071067811865476        # 1/sqrt(2)
_SQRT_2_OVER_PI = 0.7978845608028654   # sqrt(2/pi), for tanh GELU


def _gelu(x, approximate):
    if approximate:
        # tanh form runs on the (otherwise idle) EUP slot.
        return 0.5 * x * (1.0 + jnp.tanh(_SQRT_2_OVER_PI * (x + 0.044715 * x * x * x)))
    # torch.nn.GELU() default: exact erf-based GELU.
    return 0.5 * x * (1.0 + lax.erf(x * _INV_SQRT2))


def _round_up(x, n):
    return ((x + n - 1) // n) * n


def _vmem_limit_bytes():
    # ~75% of per-core VMEM (v5e/v6e: 128 MiB -> 96 MiB, v7x: 64 MiB -> 48 MiB),
    # leaving headroom for compiler-internal scratch / spills.
    try:
        cap = int(pltpu.get_tpu_info().vmem_capacity_bytes)
        return max(32 * 1024 * 1024, min((cap * 3) // 4, 100 * 1024 * 1024))
    except Exception:
        return 48 * 1024 * 1024


def _resident_spec(block_shape):
    """BlockSpec for a block whose index_map is constant across the grid.

    Single-buffer it (double-buffering a constant block buys nothing and doubles
    its VMEM footprint).  Falls back to the default spec on older BlockSpec APIs.
    """
    index_map = lambda i: (0, 0)
    try:
        return pl.BlockSpec(block_shape, index_map, pipeline_mode=pl.Buffered(1))
    except TypeError:
        return pl.BlockSpec(block_shape, index_map)


def mlp_kernel(x_ref, w1_ref, b1_ref, w2_ref, b2_ref, o_ref, acc_ref,
               *, n_chunks, chunk, approximate_gelu):
    """fc1 + GELU + fc2 for one row-tile of tokens, hidden dim chunked."""
    x = x_ref[...]                       # (tile_m, d_in_p), compute dtype
    acc_ref[...] = jnp.zeros_like(acc_ref)

    def body(c, carry):
        off = pl.multiple_of(c * chunk, chunk)
        # fc1 partial: (tile_m, chunk), f32 accumulation on the MXU.
        h = jnp.dot(x, w1_ref[:, pl.ds(off, chunk)],
                    preferred_element_type=jnp.float32)
        h = h + b1_ref[:, pl.ds(off, chunk)]          # bias add in f32
        h = _gelu(h, approximate_gelu)                # GELU in f32
        # dropout(p=0.0) -> identity
        h = h.astype(w2_ref.dtype)                    # cast just before 2nd MXU pass
        acc_ref[...] += jnp.dot(h, w2_ref[pl.ds(off, chunk), :],
                                preferred_element_type=jnp.float32)
        return carry

    lax.fori_loop(0, n_chunks, body, 0, unroll=True)

    # dropout(p=0.0) -> identity
    o_ref[...] = (acc_ref[...] + b2_ref[...]).astype(o_ref.dtype)


def prepare_mlp_params(w1, b1, w2, b2, *, compute_dtype=jnp.bfloat16, hidden_chunk=512):
    """Pad/cast weights ONCE (hoisted out of the per-forward-call path).

    Feature dims are zero-padded to lane-dense multiples of 128 (exact: padded
    hidden units get b=0 -> gelu(0)=0, padded W2 rows/cols are 0).
    Returns ((w1p, b1p, w2p, b2p), meta) with static metadata for the call.
    """
    d_in, d_hidden = w1.shape
    d_out = w2.shape[1]
    cdt = jnp.dtype(compute_dtype)

    d_in_p = _round_up(d_in, 128)
    chunk = _round_up(min(hidden_chunk, _round_up(d_hidden, 128)), 128)
    d_h_p = _round_up(d_hidden, chunk)
    d_out_p = _round_up(d_out, 128)

    w1p = jnp.pad(jnp.asarray(w1, cdt), ((0, d_in_p - d_in), (0, d_h_p - d_hidden)))
    w2p = jnp.pad(jnp.asarray(w2, cdt), ((0, d_h_p - d_hidden), (0, d_out_p - d_out)))
    b1p = jnp.pad(jnp.asarray(b1, jnp.float32), (0, d_h_p - d_hidden)).reshape(1, d_h_p)
    b2p = jnp.pad(jnp.asarray(b2, jnp.float32), (0, d_out_p - d_out)).reshape(1, d_out_p)

    meta = dict(d_out=d_out, chunk=chunk)
    return (w1p, b1p, w2p, b2p), meta


@functools.partial(jax.jit,
                   static_argnames=("d_out", "chunk", "tile_m", "approximate_gelu"))
def mlp_pallas_prepared(x, w1p, b1p, w2p, b2p, *, d_out, chunk,
                        tile_m=256, approximate_gelu=False):
    """x: (..., d_in) -> (..., d_out) using pre-padded/cast weights."""
    orig_shape = x.shape
    out_dtype = x.dtype
    d_in = orig_shape[-1]
    d_in_p, d_h_p = w1p.shape
    d_out_p = w2p.shape[1]
    n_chunks = d_h_p // chunk
    cdt = w1p.dtype

    x2 = x.reshape(-1, d_in).astype(cdt)
    m = x2.shape[0]

    # Sublane granule: 8 rows for 32-bit, 16 for bf16 (packing).
    granule = 8 * max(1, 4 // cdt.itemsize)
    m_g = _round_up(m, granule)
    tile_m_eff = max(granule, min(tile_m, m_g))
    # Keep >= 2 grid steps when possible (both v7x TensorCores get work; weights
    # are resident so extra steps are nearly free).
    if m_g > granule and m_g <= tile_m_eff:
        tile_m_eff = max(granule, _round_up((m_g + 1) // 2, granule))
    m_pad = _round_up(m_g, tile_m_eff)

    x2 = jnp.pad(x2, ((0, m_pad - m), (0, d_in_p - d_in)))

    grid = (m_pad // tile_m_eff,)
    kernel = functools.partial(mlp_kernel, n_chunks=n_chunks, chunk=chunk,
                               approximate_gelu=approximate_gelu)

    out = pl.pallas_call(
        kernel,
        out_shape=jax.ShapeDtypeStruct((m_pad, d_out_p), out_dtype),
        grid_spec=pltpu.PrefetchScalarGridSpec(
            num_scalar_prefetch=0,
            grid=grid,
            in_specs=[
                pl.BlockSpec((tile_m_eff, d_in_p), lambda i: (i, 0)),  # x row-tile
                _resident_spec((d_in_p, d_h_p)),                       # W1 (resident)
                _resident_spec((1, d_h_p)),                            # b1
                _resident_spec((d_h_p, d_out_p)),                      # W2 (resident)
                _resident_spec((1, d_out_p)),                          # b2
            ],
            out_specs=pl.BlockSpec((tile_m_eff, d_out_p), lambda i: (i, 0)),
            scratch_shapes=[pltpu.VMEM((tile_m_eff, d_out_p), jnp.float32)],
        ),
        compiler_params=pltpu.CompilerParams(
            dimension_semantics=("parallel",),
            vmem_limit_bytes=_vmem_limit_bytes(),
        ),
    )(x2, w1p, b1p, w2p, b2p)

    out = out[:m, :d_out]
    return out.reshape(*orig_shape[:-1], d_out)


def mlp_pallas(x, w1, b1, w2, b2, *, compute_dtype=jnp.bfloat16, tile_m=256,
               hidden_chunk=512, approximate_gelu=False):
    """Convenience wrapper: pads/casts weights then calls the kernel.

    For repeated forward passes, call prepare_mlp_params() once and reuse the
    padded weights with mlp_pallas_prepared() (avoids re-padding per call).
    """
    (w1p, b1p, w2p, b2p), meta = prepare_mlp_params(
        w1, b1, w2, b2, compute_dtype=compute_dtype, hidden_chunk=hidden_chunk)
    return mlp_pallas_prepared(x, w1p, b1p, w2p, b2p,
                               d_out=meta["d_out"], chunk=meta["chunk"],
                               tile_m=tile_m, approximate_gelu=approximate_gelu)


def mlp_reference(x, w1, b1, w2, b2):
    h = jnp.dot(x, w1) + b1
    h = 0.5 * h * (1.0 + lax.erf(h * _INV_SQRT2))
    return jnp.dot(h, w2) + b2


if __name__ == "__main__":
    key = jax.random.PRNGKey(0)
    k_x, k_w1, k_b1, k_w2, k_b2 = jax.random.split(key, 5)

    # Small ViT-style shapes: batch=2, seq=8, in=32, hidden=64, out=32.
    B, S = 2, 8
    in_features, hidden_features, out_features = 32, 64, 32

    x = jax.random.normal(k_x, (B, S, in_features), dtype=jnp.float32)
    w1 = jax.random.normal(k_w1, (in_features, hidden_features), jnp.float32) * 0.05
    b1 = jax.random.normal(k_b1, (hidden_features,), jnp.float32) * 0.05
    w2 = jax.random.normal(k_w2, (hidden_features, out_features), jnp.float32) * 0.05
    b2 = jax.random.normal(k_b2, (out_features,), jnp.float32) * 0.05

    ref = mlp_reference(x, w1, b1, w2, b2)

    # 1) exact f32 path (also exercises the >=2-grid-step row split).
    out_f32 = jax.block_until_ready(
        mlp_pallas(x, w1, b1, w2, b2, compute_dtype=jnp.float32))
    assert out_f32.shape == (B, S, out_features), out_f32.shape
    assert jnp.allclose(out_f32, ref, atol=1e-5, rtol=1e-5), float(
        jnp.max(jnp.abs(out_f32 - ref)))

    # 2) default bf16-matmul path (f32 accumulation) on the same inputs.
    out_bf16 = jax.block_until_ready(mlp_pallas(x, w1, b1, w2, b2))
    assert jnp.allclose(out_bf16, ref, atol=5e-2, rtol=5e-2), float(
        jnp.max(jnp.abs(out_bf16 - ref)))

    # 3) approximate (tanh) GELU option.
    out_tanh = jax.block_until_ready(
        mlp_pallas(x, w1, b1, w2, b2, approximate_gelu=True))
    assert jnp.allclose(out_tanh, ref, atol=5e-2, rtol=5e-2), float(
        jnp.max(jnp.abs(out_tanh - ref)))

    # 4) ViT-like token count (197/image, not tile-divisible), hoisted weight
    #    prep, and hidden_chunk=128 so the chunked-accumulation loop runs >1 step.
    kx2, kw3, kb3, kw4, kb4 = jax.random.split(jax.random.PRNGKey(1), 5)
    x_big = jax.random.normal(kx2, (2, 197, 128), dtype=jnp.float32)
    w3 = jax.random.normal(kw3, (128, 256), jnp.float32) * 0.05
    b3 = jax.random.normal(kb3, (256,), jnp.float32) * 0.05
    w4 = jax.random.normal(kw4, (256, 128), jnp.float32) * 0.05
    b4 = jax.random.normal(kb4, (128,), jnp.float32) * 0.05

    params, meta = prepare_mlp_params(w3, b3, w4, b4,
                                      compute_dtype=jnp.bfloat16, hidden_chunk=128)
    out2 = jax.block_until_ready(
        mlp_pallas_prepared(x_big, *params, d_out=meta["d_out"],
                            chunk=meta["chunk"], tile_m=256))
    ref2 = mlp_reference(x_big, w3, b3, w4, b4)
    assert out2.shape == (2, 197, 128), out2.shape
    assert jnp.allclose(out2, ref2, atol=2e-2, rtol=2e-2), float(
        jnp.max(jnp.abs(out2 - ref2)))

    print("KERNEL_OK")
</pallas_src>

<mosaic_0001>
module attributes {stable_mosaic.version = 11 : i64} {
  func.func @mlp_kernel(%arg0: i32, %arg1: memref<8x128xf32, #tpu.memory_space<vmem>>, %arg2: memref<128x128xf32, #tpu.memory_space<vmem>>, %arg3: memref<1x128xf32, #tpu.memory_space<vmem>>, %arg4: memref<128x128xf32, #tpu.memory_space<vmem>>, %arg5: memref<1x128xf32, #tpu.memory_space<vmem>>, %arg6: memref<8x128xf32, #tpu.memory_space<vmem>>, %arg7: memref<8x128xf32, #tpu.memory_space<vmem>>) attributes {dimension_semantics = [#tpu.dimension_semantics<parallel>], iteration_bounds = array<i64: 2>, scalar_prefetch = 0 : i64, scratch_operands = 1 : i64, tpu.core_type = #tpu.core_type<tc>, window_params = [{transform_indices = @transform_0, window_bounds = array<i64: 8, 128>}, {pipeline_mode = #tpu.pipeline_mode<synchronous>, transform_indices = @transform_1, window_bounds = array<i64: 128, 128>}, {pipeline_mode = #tpu.pipeline_mode<synchronous>, transform_indices = @transform_2, window_bounds = array<i64: 1, 128>}, {pipeline_mode = #tpu.pipeline_mode<synchronous>, transform_indices = @transform_3, window_bounds = array<i64: 128, 128>}, {pipeline_mode = #tpu.pipeline_mode<synchronous>, transform_indices = @transform_4, window_bounds = array<i64: 1, 128>}, {transform_indices = @transform_5, window_bounds = array<i64: 8, 128>}]} {
    %c0 = arith.constant 0 : index
    %c0_0 = arith.constant 0 : index
    %0 = vector.load %arg1[%c0, %c0_0] : memref<8x128xf32, #tpu.memory_space<vmem>>, vector<8x128xf32>
    %cst = arith.constant 0.000000e+00 : f32
    %1 = vector.broadcast %cst : f32 to vector<8x128xf32>
    %c0_1 = arith.constant 0 : index
    %c0_2 = arith.constant 0 : index
    %2 = vector.load %arg7[%c0_1, %c0_2] : memref<8x128xf32, #tpu.memory_space<vmem>>, vector<8x128xf32>
    tpu.vector_store %arg7[%c0_1, %c0_2], %1 {strides = array<i32>} : memref<8x128xf32, #tpu.memory_space<vmem>>, vector<8x128xf32>,
    %c0_i32 = arith.constant 0 : i32
    %c128_i32 = arith.constant 128 : i32
    %3 = arith.muli %c0_i32, %c128_i32 : i32
    %4 = tpu.assume_multiple %3, 128 : i32
    %c0_3 = arith.constant 0 : index
    %5 = arith.index_cast %4 : i32 to index
    %6 = vector.load %arg2[%c0_3, %5] : memref<128x128xf32, #tpu.memory_space<vmem>>, vector<128x128xf32>
    %cst_4 = arith.constant dense<0.000000e+00> : vector<8x128xf32>
    %7 = tpu.matmul %0, %6, %cst_4 {dimension_numbers = #tpu.dot_dimension_numbers<[1], [0], [0], [1], [0, 0, 1, 1], [], []>} : vector<8x128xf32>, vector<128x128xf32>, vector<8x128xf32> -> vector<8x128xf32>
    %c0_5 = arith.constant 0 : index
    %8 = arith.index_cast %4 : i32 to index
    %9 = vector.load %arg3[%c0_5, %8] : memref<1x128xf32, #tpu.memory_space<vmem>>, vector<1x128xf32>
    %10 = vector.broadcast %9 : vector<1x128xf32> to vector<8x128xf32>
    %11 = arith.addf %7, %10 : vector<8x128xf32>
    %cst_6 = arith.constant 5.000000e-01 : f32
    %12 = vector.broadcast %cst_6 : f32 to vector<8x128xf32>
    %13 = arith.mulf %12, %11 : vector<8x128xf32>
    %cst_7 = arith.constant 0.707106769 : f32
    %14 = vector.broadcast %cst_7 : f32 to vector<8x128xf32>
    %15 = arith.mulf %11, %14 : vector<8x128xf32>
    %16 = math.erf %15 : vector<8x128xf32>
    %cst_8 = arith.constant 1.000000e+00 : f32
    %17 = vector.broadcast %cst_8 : f32 to vector<8x128xf32>
    %18 = arith.addf %17, %16 : vector<8x128xf32>
    %19 = arith.mulf %13, %18 : vector<8x128xf32>
    %c0_9 = arith.constant 0 : index
    %c0_10 = arith.constant 0 : index
    %20 = vector.load %arg7[%c0_9, %c0_10] : memref<8x128xf32, #tpu.memory_space<vmem>>, vector<8x128xf32>
    %21 = arith.index_cast %4 : i32 to index
    %c0_11 = arith.constant 0 : index
    %22 = vector.load %arg4[%21, %c0_11] : memref<128x128xf32, #tpu.memory_space<vmem>>, vector<128x128xf32>
    %cst_12 = arith.constant dense<0.000000e+00> : vector<8x128xf32>
    %23 = tpu.matmul %19, %22, %cst_12 {dimension_numbers = #tpu.dot_dimension_numbers<[1], [0], [0], [1], [0, 0, 1, 1], [], []>} : vector<8x128xf32>, vector<128x128xf32>, vector<8x128xf32> -> vector<8x128xf32>
    %24 = arith.addf %20, %23 : vector<8x128xf32>
    %c0_13 = arith.constant 0 : index
    %c0_14 = arith.constant 0 : index
    %25 = vector.load %arg7[%c0_13, %c0_14] : memref<8x128xf32, #tpu.memory_space<vmem>>, vector<8x128xf32>
    tpu.vector_store %arg7[%c0_13, %c0_14], %24 {strides = array<i32>} : memref<8x128xf32, #tpu.memory_space<vmem>>, vector<8x128xf32>,
    %c1_i32 = arith.constant 1 : i32
    %c0_15 = arith.constant 0 : index
    %c0_16 = arith.constant 0 : index
    %26 = vector.load %arg7[%c0_15, %c0_16] : memref<8x128xf32, #tpu.memory_space<vmem>>, vector<8x128xf32>
    %c0_17 = arith.constant 0 : index
    %c0_18 = arith.constant 0 : index
    %27 = vector.load %arg5[%c0_17, %c0_18] : memref<1x128xf32, #tpu.memory_space<vmem>>, vector<1x128xf32>
    %28 = vector.broadcast %27 : vector<1x128xf32> to vector<8x128xf32>
    %29 = arith.addf %26, %28 : vector<8x128xf32>
    %c0_19 = arith.constant 0 : index
    %c0_20 = arith.constant 0 : index
    %30 = vector.load %arg6[%c0_19, %c0_20] : memref<8x128xf32, #tpu.memory_space<vmem>>, vector<8x128xf32>
    tpu.vector_store %arg6[%c0_19, %c0_20], %29 {strides = array<i32>} : memref<8x128xf32, #tpu.memory_space<vmem>>, vector<8x128xf32>,
    return
  }
  func.func @transform_0(%arg0: i32) -> (i32, i32) {
    %c0_i32 = arith.constant 0 : i32
    %c0_i32_0 = arith.constant 0 : i32
    return %arg0, %c0_i32 : i32, i32
  }
  func.func @transform_1(%arg0: i32) -> (i32, i32) {
    %c0_i32 = arith.constant 0 : i32
    %c0_i32_0 = arith.constant 0 : i32
    %c0_i32_1 = arith.constant 0 : i32
    return %c0_i32, %c0_i32_0 : i32, i32
  }
  func.func @transform_2(%arg0: i32) -> (i32, i32) {
    %c0_i32 = arith.constant 0 : i32
    %c0_i32_0 = arith.constant 0 : i32
    %c0_i32_1 = arith.constant 0 : i32
    return %c0_i32, %c0_i32_0 : i32, i32
  }
  func.func @transform_3(%arg0: i32) -> (i32, i32) {
    %c0_i32 = arith.constant 0 : i32
    %c0_i32_0 = arith.constant 0 : i32
    %c0_i32_1 = arith.constant 0 : i32
    return %c0_i32, %c0_i32_0 : i32, i32
  }
  func.func @transform_4(%arg0: i32) -> (i32, i32) {
    %c0_i32 = arith.constant 0 : i32
    %c0_i32_0 = arith.constant 0 : i32
    %c0_i32_1 = arith.constant 0 : i32
    return %c0_i32, %c0_i32_0 : i32, i32
  }
  func.func @transform_5(%arg0: i32) -> (i32, i32) {
    %c0_i32 = arith.constant 0 : i32
    %c0_i32_0 = arith.constant 0 : i32
    return %arg0, %c0_i32 : i32, i32
  }
}

</mosaic_0001>

<llo_original>
// kernel: mlp_pallas_prepared.1
$region0: #{mlp_pallas_prepared.1}
  #allocation0 [shape = 'u32[]', space=smem, size = 0x4, offset = 0x4, fixed_abs, tag = 'smem constant byte address 0x4 - core index']
  #allocation1 [shape = 'u32[144,128]{1,0:T(1,128)}', space=vmem, size = 0x12000, scoped, tag = 'internal scratch']
  #allocation2 [shape = 'f32[8,128]{1,0:T(8,128)}', space=vmem, size = 0x1000, scoped, tag = 'scratch operand']
  %s0 = inlined_call_operand.vmem [shape: f32[16,128], index: 0, kind: input, shape index: {}]
  %s1 = inlined_call_operand.hbm [shape: f32[128,128], index: 1, kind: input, shape index: {}]
  %s2 = inlined_call_operand.vmem [shape: f32[1,128], index: 2, kind: input, shape index: {}]
  %s3 = inlined_call_operand.hbm [shape: f32[128,128], index: 3, kind: input, shape index: {}]
  %s4 = inlined_call_operand.vmem [shape: f32[1,128], index: 4, kind: input, shape index: {}]
  %s5 = inlined_call_operand.vmem [shape: f32[16,128], index: 5, kind: output, shape index: {}]
  %s6 = sld [smem:[#allocation0]]
  $region61: #{mlp_pallas_prepared.1} parent=0
    _
  %s8 = ssub.s32 1, %s6
  %s9 = scalar_select 0, %s8, %s6
  $region1: #{mlp_pallas_prepared.1} parent=0
    #allocation3 [shape = 'u8[65536]{0}', space=vmem, size = 0x10000, scoped, tag = 'input window, operand 1, single buffered']
    #allocation4 [shape = 's32[2]{0}', space=sflag, size = 0x8, scoped, tag = 'scoped memory for mlp_pallas_prepared.1']
    #allocation5 [shape = 'u8[65536]{0}', space=vmem, size = 0x10000, scoped, tag = 'input window, operand 3, single buffered']
    #allocation6 [shape = 's32[1]{0}', space=sflag, size = 0x4, scoped, tag = 'scoped memory for mlp_pallas_prepared.1']
    %10 = vsyncpa [#allocation4], 0
    %11 = vsyncpa [#allocation6], 0
    loop: start=0, step=1, limit=4
    $region2: #{mlp_pallas_prepared.1} parent=1 // loop_pre_header
      _
    $region3: #{mlp_pallas_prepared.1} parent=1 // loop_header
      %s13 = sphi 0, %s17
      %p14 = scmp.ge.s32.totalorder %s13, 4
      %s23 = sphi 0, %s25
      %s26 = sphi 0, %s23
      %s27 = sphi 0, %s26
      %s43 = sphi 0, %s27
      %s47 = sphi 0, %s47
      %s49 = sphi 0, %s47
      %s50 = sphi 0, %s49
      %s64 = sphi 0, %s50
      %s68 = sphi 0, %s68
      %s70 = sphi 0, %s68
      %s71 = sphi 0, %s70
      %s85 = sphi 0, %s71
      %s89 = sphi 0, %s89
      %s91 = sphi 0, %s89
      %s92 = sphi 0, %s91
      %s106 = sphi 0, %s92
      %s110 = sphi 0, %s110
      %s112 = sphi 0, %s110
      %s113 = sphi 0, %s112
      %s127 = sphi 0, %s113
      %s133 = sphi 0, %s135
      %s136 = sphi 0, %s133
      %s137 = sphi 0, %s136
      %s153 = sphi 0, %s137
    $region4: #{mlp_pallas_prepared.1} parent=1 // loop_header_branch
      %16 = sbr.rel (%p14) target = $region8
    $region5: #{mlp_pallas_prepared.1} parent=1 // loop_body
      %s18 = ssub.s32 %s13, 1
      %s19 = ssub.s32 %s13, 2
      %s20 = sadd.s32 %s13, 1
      %s21 = ssub.s32 %s13, %s20
      %p22 = scmp.eq.s32.totalorder %s21, 0
      %s24 = sadd.s32 %s23, 1
      %s25 = scalar_select %p22, %s23, %s24
      %p28 = pneg %p22
      %p29 = scmp.eq.s32.totalorder %s13, 1
      %p30 = por %p28, %p29
      %p31 = scmp.ne.s32.totalorder %s23, %s26
      %p32 = scmp.eq.s32.totalorder %s13, 0
      %p33 = por %p31, %p32
      %p34 = scmp.ne.s32.totalorder %s23, %s26
      %p35 = scmp.eq.s32.totalorder %s18, 1
      %p36 = por %p34, %p35
      %p37 = scmp.ne.s32.totalorder %s26, %s27
      %p38 = scmp.eq.s32.totalorder %s18, 0
      %p39 = por %p37, %p38
      %p40 = scmp.ne.s32.totalorder %s26, %s27
      %p41 = scmp.eq.s32.totalorder %s19, 1
      %p42 = por %p40, %p41
      %p44 = scmp.ne.s32.totalorder %s27, %s43
      %p45 = scmp.eq.s32.totalorder %s19, 0
      %p46 = por %p44, %p45
      %s48 = sadd.s32 %s47, 1
      %p51 = scmp.eq.s32.totalorder %s13, 1
      %p52 = scmp.ne.s32.totalorder %s47, %s49
      %p53 = scmp.eq.s32.totalorder %s13, 0
      %p54 = por %p52, %p53
      %p55 = scmp.ne.s32.totalorder %s47, %s49
      %p56 = scmp.eq.s32.totalorder %s18, 1
      %p57 = por %p55, %p56
      %p58 = scmp.ne.s32.totalorder %s49, %s50
      %p59 = scmp.eq.s32.totalorder %s18, 0
      %p60 = por %p58, %p59
      %p61 = scmp.ne.s32.totalorder %s49, %s50
      %p62 = scmp.eq.s32.totalorder %s19, 1
      %p63 = por %p61, %p62
      %p65 = scmp.ne.s32.totalorder %s50, %s64
      %p66 = scmp.eq.s32.totalorder %s19, 0
      %p67 = por %p65, %p66
      %s69 = sadd.s32 %s68, 1
      %p72 = scmp.eq.s32.totalorder %s13, 1
      %p73 = scmp.ne.s32.totalorder %s68, %s70
      %p74 = scmp.eq.s32.totalorder %s13, 0
      %p75 = por %p73, %p74
      %p76 = scmp.ne.s32.totalorder %s68, %s70
      %p77 = scmp.eq.s32.totalorder %s18, 1
      %p78 = por %p76, %p77
      %p79 = scmp.ne.s32.totalorder %s70, %s71
      %p80 = scmp.eq.s32.totalorder %s18, 0
      %p81 = por %p79, %p80
      %p82 = scmp.ne.s32.totalorder %s70, %s71
      %p83 = scmp.eq.s32.totalorder %s19, 1
      %p84 = por %p82, %p83
      %p86 = scmp.ne.s32.totalorder %s71, %s85
      %p87 = scmp.eq.s32.totalorder %s19, 0
      %p88 = por %p86, %p87
      %s90 = sadd.s32 %s89, 1
      %p93 = scmp.eq.s32.totalorder %s13, 1
      %p94 = scmp.ne.s32.totalorder %s89, %s91
      %p95 = scmp.eq.s32.totalorder %s13, 0
      %p96 = por %p94, %p95
      %p97 = scmp.ne.s32.totalorder %s89, %s91
      %p98 = scmp.eq.s32.totalorder %s18, 1
      %p99 = por %p97, %p98
      %p100 = scmp.ne.s32.totalorder %s91, %s92
      %p101 = scmp.eq.s32.totalorder %s18, 0
      %p102 = por %p100, %p101
      %p103 = scmp.ne.s32.totalorder %s91, %s92
      %p104 = scmp.eq.s32.totalorder %s19, 1
      %p105 = por %p103, %p104
      %p107 = scmp.ne.s32.totalorder %s92, %s106
      %p108 = scmp.eq.s32.totalorder %s19, 0
      %p109 = por %p107, %p108
      %s111 = sadd.s32 %s110, 1
      %p114 = scmp.eq.s32.totalorder %s13, 1
      %p115 = scmp.ne.s32.totalorder %s110, %s112
      %p116 = scmp.eq.s32.totalorder %s13, 0
      %p117 = por %p115, %p116
      %p118 = scmp.ne.s32.totalorder %s110, %s112
      %p119 = scmp.eq.s32.totalorder %s18, 1
      %p120 = por %p118, %p119
      %p121 = scmp.ne.s32.totalorder %s112, %s113
      %p122 = scmp.eq.s32.totalorder %s18, 0
      %p123 = por %p121, %p122
      %p124 = scmp.ne.s32.totalorder %s112, %s113
      %p125 = scmp.eq.s32.totalorder %s19, 1
      %p126 = por %p124, %p125
      %p128 = scmp.ne.s32.totalorder %s113, %s127
      %p129 = scmp.eq.s32.totalorder %s19, 0
      %p130 = por %p128, %p129
      %s131 = ssub.s32 %s13, %s20
      %p132 = scmp.eq.s32.totalorder %s131, 0
      %s134 = sadd.s32 %s133, 1
      %s135 = scalar_select %p132, %s133, %s134
      %p138 = pneg %p132
      %p139 = scmp.eq.s32.totalorder %s13, 1
      %p140 = por %p138, %p139
      %p141 = scmp.ne.s32.totalorder %s133, %s136
      %p142 = scmp.eq.s32.totalorder %s13, 0
      %p143 = por %p141, %p142
      %p144 = scmp.ne.s32.totalorder %s133, %s136
      %p145 = scmp.eq.s32.totalorder %s18, 1
      %p146 = por %p144, %p145
      %p147 = scmp.ne.s32.totalorder %s136, %s137
      %p148 = scmp.eq.s32.totalorder %s18, 0
      %p149 = por %p147, %p148
      %p150 = scmp.ne.s32.totalorder %s136, %s137
      %p151 = scmp.eq.s32.totalorder %s19, 1
      %p152 = por %p150, %p151
      %p154 = scmp.ne.s32.totalorder %s137, %s153
      %p155 = scmp.eq.s32.totalorder %s19, 0
      %p156 = por %p154, %p155
      %p157 = scmp.le.s32.totalorder 1, %s13
      %p158 = scmp.lt.s32.totalorder %s13, 3
      %p159 = pnand %p157, %p158
      %p160 = pneg %p159
      // Predicated region
      $region9: #{mlp_pallas_prepared.1} parent=5 // pred_check
        _
      $region10: #{mlp_pallas_prepared.1} parent=5 // pred_check_branch
        %162 = sbr.rel (%p159) target = $region12
      $region11: #{mlp_pallas_prepared.1} parent=5 // pred_region
        %s163 = ssub.s32 %s13, 1
        // Predicated region
        $region13: #{mlp_pallas_prepared.1} parent=11 // pred_check
          %p164 = pneg %p60
        $region14: #{mlp_pallas_prepared.1} parent=11 // pred_check_branch
          %166 = sbr.rel (%p164) target = $region16
        $region15: #{mlp_pallas_prepared.1} parent=11 // pred_region
          %s168 = ssub.s32 2048, 2048
          %169 = vsyncadd [#allocation4], %s168
          %s170 = sshll.u32 [#allocation3], 4
          %s171 = int_to_ptr.vmem [resolvable:$true] %s170
          %176 = dma.hbm_to_vmem [thread:$0]  %s1, 2048, %s171, [#allocation4], 128, 128, 8
        $region16: #{mlp_pallas_prepared.1} parent=11 // pred_fallthru
          _
        // Predicated region
        $region17: #{mlp_pallas_prepared.1} parent=11 // pred_check
          %p177 = pneg %p81
        $region18: #{mlp_pallas_prepared.1} parent=11 // pred_check_branch
          %179 = sbr.rel (%p177) target = $region20
        $region19: #{mlp_pallas_prepared.1} parent=11 // pred_region
          _
        $region20: #{mlp_pallas_prepared.1} parent=11 // pred_fallthru
          _
        // Predicated region
        $region21: #{mlp_pallas_prepared.1} parent=11 // pred_check
          %p180 = pneg %p102
        $region22: #{mlp_pallas_prepared.1} parent=11 // pred_check_branch
          %182 = sbr.rel (%p180) target = $region24
        $region23: #{mlp_pallas_prepared.1} parent=11 // pred_region
          %s184 = ssub.s32 2048, 2048
          %185 = vsyncadd [#allocation6], %s184
          %s186 = sshll.u32 [#allocation5], 4
          %s187 = int_to_ptr.vmem [resolvable:$true] %s186
          %192 = dma.hbm_to_vmem [thread:$0]  %s3, 2048, %s187, [#allocation6], 128, 128, 8
        $region24: #{mlp_pallas_prepared.1} parent=11 // pred_fallthru
          _
        // Predicated region
        $region25: #{mlp_pallas_prepared.1} parent=11 // pred_check
          %p193 = pneg %p123
        $region26: #{mlp_pallas_prepared.1} parent=11 // pred_check_branch
          %195 = sbr.rel (%p193) target = $region28
        $region27: #{mlp_pallas_prepared.1} parent=11 // pred_region
          _
        $region28: #{mlp_pallas_prepared.1} parent=11 // pred_fallthru
          _
      $region12: #{mlp_pallas_prepared.1} parent=5 // pred_fallthru
        _
      %p196 = scmp.lt.s32.totalorder %s13, 2
      // Predicated region
      $region29: #{mlp_pallas_prepared.1} parent=5 // pred_check
        %p197 = pneg %p196
      $region30: #{mlp_pallas_prepared.1} parent=5 // pred_check_branch
        %199 = sbr.rel (%p197) target = $region32
      $region31: #{mlp_pallas_prepared.1} parent=5 // pred_region
        // Predicated region
        $region33: #{mlp_pallas_prepared.1} parent=31 // pred_check
          %p200 = pneg %p33
        $region34: #{mlp_pallas_prepared.1} parent=31 // pred_check_branch
          %202 = sbr.rel (%p200) target = $region36
        $region35: #{mlp_pallas_prepared.1} parent=31 // pred_region
          %p203 = scmp.lt.s32.totalorder %s13, 1
          %s204 = scalar_select %p203, %s13, 1
          %s205 = smul.addr %s204, 8
          %s206 = scalar_lea.vmem %s0, %s205
        $region36: #{mlp_pallas_prepared.1} parent=31 // pred_fallthru
          _
      $region32: #{mlp_pallas_prepared.1} parent=5 // pred_fallthru
        _
      %p207 = scmp.le.s32.totalorder 1, %s13
      %p208 = scmp.lt.s32.totalorder %s13, 3
      %p209 = pnand %p207, %p208
      %p210 = pneg %p209
      // Predicated region
      $region37: #{mlp_pallas_prepared.1} parent=5 // pred_check
        _
      $region38: #{mlp_pallas_prepared.1} parent=5 // pred_check_branch
        %212 = sbr.rel (%p209) target = $region40
      $region39: #{mlp_pallas_prepared.1} parent=5 // pred_region
        %s213 = ssub.s32 %s13, 1
        // Predicated region
        $region41: #{mlp_pallas_prepared.1} parent=39 // pred_check
          %p214 = pneg %p60
        $region42: #{mlp_pallas_prepared.1} parent=39 // pred_check_branch
          %216 = sbr.rel (%p214) target = $region44
        $region43: #{mlp_pallas_prepared.1} parent=39 // pred_region
          %217 = dma.done [#allocation4], 2048
        $region44: #{mlp_pallas_prepared.1} parent=39 // pred_fallthru
          _
        // Predicated region
        $region45: #{mlp_pallas_prepared.1} parent=39 // pred_check
          %p218 = pneg %p102
        $region46: #{mlp_pallas_prepared.1} parent=39 // pred_check_branch
          %220 = sbr.rel (%p218) target = $region48
        $region47: #{mlp_pallas_prepared.1} parent=39 // pred_region
          %221 = dma.done [#allocation6], 2048
        $region48: #{mlp_pallas_prepared.1} parent=39 // pred_fallthru
          _
        %p222 = scmp.lt.s32.totalorder %s18, 1
        %s223 = scalar_select %p222, %s18, 1
        %s224 = smul.addr %s223, 8
        %s225 = scalar_lea.vmem %s0, %s224
        %p226 = pneg %p39
        %p227 = pneg %p36
        %p228 = pneg %p60
        %p229 = pneg %p57
        %p230 = pneg %p81
        %p231 = pneg %p78
        %p232 = pneg %p102
        %p233 = pneg %p99
        %p234 = pneg %p123
        %p235 = pneg %p120
        %p236 = pneg %p149
        %p237 = pneg %p146
        %p238 = scmp.lt.s32.totalorder %s18, 1
        %s239 = scalar_select %p238, %s18, 1
        %s240 = smul.addr %s239, 8
        %s241 = scalar_lea.vmem %s5, %s240
        %p242 = scmp.lt.s32.totalorder %s18, 1
        %s243 = scalar_select %p242, %s18, 1
        %s244 = smul.addr %s243, 8
        %s245 = scalar_lea.vmem %s0, %s244
        %p246 = scmp.lt.s32.totalorder %s18, 1
        %s247 = scalar_select %p246, %s18, 1
        %s248 = smul.addr %s247, 8
        %s249 = scalar_lea.vmem %s5, %s248
        %v250 = vld [vmem:[%s245] sm:$0xff]
        %251 = vst [vmem:[#allocation2] sm:$0xff] 0.0
        %v252 = vld [vmem:[#allocation3] sm:$0xff]
        %v253 = vld [vmem:[#allocation3 + $0x8] sm:$0xff]
        %v254 = vld [vmem:[#allocation3 + $0x10] sm:$0xff]
        %v255 = vld [vmem:[#allocation3 + $0x18] sm:$0xff]
        %v256 = vld [vmem:[#allocation3 + $0x20] sm:$0xff]
        %v257 = vld [vmem:[#allocation3 + $0x28] sm:$0xff]
        %v258 = vld [vmem:[#allocation3 + $0x30] sm:$0xff]
        %v259 = vld [vmem:[#allocation3 + $0x38] sm:$0xff]
        %v260 = vld [vmem:[#allocation3 + $0x40] sm:$0xff]
        %v261 = vld [vmem:[#allocation3 + $0x48] sm:$0xff]
        %v262 = vld [vmem:[#allocation3 + $0x50] sm:$0xff]
        %v263 = vld [vmem:[#allocation3 + $0x58] sm:$0xff]
        %v264 = vld [vmem:[#allocation3 + $0x60] sm:$0xff]
        %v265 = vld [vmem:[#allocation3 + $0x68] sm:$0xff]
        %v266 = vld [vmem:[#allocation3 + $0x70] sm:$0xff]
        %v267 = vld [vmem:[#allocation3 + $0x78] sm:$0xff]
        %v268 = vld [vmem:[%s2] sm:$0x1]
        %v270 = vlaneseq
        %v271 = vshrl.u32 %v270, 7
        %v272 = vsub.s32 0, %v271
        %v273 = vrot.slane %v268, %v272
        %275 = vmatprep.subr.mxu0 0.0
        %276 = vmatpush1.msra.mxu0 %v252
        %277 = vmatprep.subr.mxu0 0.0
        %278 = vmatpush1.msra.mxu0 %v253
        %279 = vmatprep.subr.mxu0 0.0
        %280 = vmatpush1.msra.mxu0 %v254
        %281 = vmatprep.subr.mxu0 0.0
        %282 = vmatpush1.msra.mxu0 %v255
        %283 = vmatprep.subr.mxu0 0.0
        %284 = vmatpush1.msra.mxu0 %v256
        %285 = vmatprep.subr.mxu0 0.0
        %286 = vmatpush1.msra.mxu0 %v257
        %287 = vmatprep.subr.mxu0 0.0
        %288 = vmatpush1.msra.mxu0 %v258
        %289 = vmatprep.subr.mxu0 0.0
        %290 = vmatpush1.msra.mxu0 %v259
        %291 = vmatprep.subr.mxu0 0.0
        %292 = vmatpush1.msra.mxu0 %v260
        %293 = vmatprep.subr.mxu0 0.0
        %294 = vmatpush1.msra.mxu0 %v261
        %295 = vmatprep.subr.mxu0 0.0
        %296 = vmatpush1.msra.mxu0 %v262
        %297 = vmatprep.subr.mxu0 0.0
        %298 = vmatpush1.msra.mxu0 %v263
        %299 = vmatprep.subr.mxu0 0.0
        %300 = vmatpush1.msra.mxu0 %v264
        %301 = vmatprep.subr.mxu0 0.0
        %302 = vmatpush1.msra.mxu0 %v265
        %303 = vmatprep.subr.mxu0 0.0
        %304 = vmatpush1.msra.mxu0 %v266
        %305 = vmatprep.subr.mxu0 0.0
        %306 = vmatpush1.msra.mxu0 %v267
        %307 = vmatprep.subr.mxu0 0.0
        %308 = vmatpush1.msra.mxu0 0.0
        %309 = vmatprep.subr.mxu0 0.0
        %310 = vmatpush1.msra.mxu0 0.0
        %311 = vmatprep.subr.mxu0 0.0
        %312 = vmatpush1.msra.mxu0 0.0
        %313 = vmatprep.subr.mxu0 0.0
        %314 = vmatpush1.msra.mxu0 0.0
        %315 = vmatprep.subr.mxu0 0.0
        %316 = vmatpush1.msra.mxu0 0.0
        %317 = vmatprep.subr.mxu0 0.0
        %318 = vmatpush1.msra.mxu0 0.0
        %319 = vmatprep.subr.mxu0 0.0
        %320 = vmatpush1.msra.mxu0 0.0
        %321 = vmatprep.subr.mxu0 0.0
        %322 = vmatpush1.msra.mxu0 0.0
        %323 = vmatprep.subr.mxu0 0.0
        %324 = vmatpush1.msra.mxu0 0.0
        %325 = vmatprep.subr.mxu0 0.0
        %326 = vmatpush1.msra.mxu0 0.0
        %327 = vmatprep.subr.mxu0 0.0
        %328 = vmatpush1.msra.mxu0 0.0
        %329 = vmatprep.subr.mxu0 0.0
        %330 = vmatpush1.msra.mxu0 0.0
        %331 = vmatprep.subr.mxu0 0.0
        %332 = vmatpush1.msra.mxu0 0.0
        %333 = vmatprep.subr.mxu0 0.0
        %334 = vmatpush1.msra.mxu0 0.0
        %335 = vmatprep.subr.mxu0 0.0
        %336 = vmatpush1.msra.mxu0 0.0
        %337 = vmatprep.subr.mxu0 0.0
        %338 = vmatpush1.msra.mxu0 0.0
        %339 = vmatprep.mubr.f32.mxu0 0.0
        %340 = vmatmul.mubr.f32.gmra.mrb[0].mxu0 %v250
        %v341 = vpop.f32.mrb[0].mxu0
        %v342 = vadd.f32 %v273, %v341
        %v343 = vpop.f32.mrb[0].mxu0
        %344 = vdwg.mxu0
        %v345 = vmul.f32 %v342, 0.5
        %v346 = vmul.f32 %v342, 0.70710677
        %v347 = verf.f32.pop %v346
        %v348 = vadd.f32 %v347, 1.0
        %v349 = vmul.f32 %v345, %v348
        %v350 = vld [vmem:[#allocation2] sm:$0xff]
        %v351 = vld [vmem:[#allocation5] sm:$0xff]
        %v352 = vld [vmem:[#allocation5 + $0x8] sm:$0xff]
        %v353 = vld [vmem:[#allocation5 + $0x10] sm:$0xff]
        %v354 = vld [vmem:[#allocation5 + $0x18] sm:$0xff]
        %v355 = vld [vmem:[#allocation5 + $0x20] sm:$0xff]
        %v356 = vld [vmem:[#allocation5 + $0x28] sm:$0xff]
        %v357 = vld [vmem:[#allocation5 + $0x30] sm:$0xff]
        %v358 = vld [vmem:[#allocation5 + $0x38] sm:$0xff]
        %v359 = vld [vmem:[#allocation5 + $0x40] sm:$0xff]
        %v360 = vld [vmem:[#allocation5 + $0x48] sm:$0xff]
        %v361 = vld [vmem:[#allocation5 + $0x50] sm:$0xff]
        %v362 = vld [vmem:[#allocation5 + $0x58] sm:$0xff]
        %v363 = vld [vmem:[#allocation5 + $0x60] sm:$0xff]
        %v364 = vld [vmem:[#allocation5 + $0x68] sm:$0xff]
        %v365 = vld [vmem:[#allocation5 + $0x70] sm:$0xff]
        %v366 = vld [vmem:[#allocation5 + $0x78] sm:$0xff]
        %367 = vmatprep.subr.mxu0 0.0
        %368 = vmatpush1.msra.mxu0 %v351
        %369 = vmatprep.subr.mxu0 0.0
        %370 = vmatpush1.msra.mxu0 %v352
        %371 = vmatprep.subr.mxu0 0.0
        %372 = vmatpush1.msra.mxu0 %v353
        %373 = vmatprep.subr.mxu0 0.0
        %374 = vmatpush1.msra.mxu0 %v354
        %375 = vmatprep.subr.mxu0 0.0
        %376 = vmatpush1.msra.mxu0 %v355
        %377 = vmatprep.subr.mxu0 0.0
        %378 = vmatpush1.msra.mxu0 %v356
        %379 = vmatprep.subr.mxu0 0.0
        %380 = vmatpush1.msra.mxu0 %v357
        %381 = vmatprep.subr.mxu0 0.0
        %382 = vmatpush1.msra.mxu0 %v358
        %383 = vmatprep.subr.mxu0 0.0
        %384 = vmatpush1.msra.mxu0 %v359
        %385 = vmatprep.subr.mxu0 0.0
        %386 = vmatpush1.msra.mxu0 %v360
        %387 = vmatprep.subr.mxu0 0.0
        %388 = vmatpush1.msra.mxu0 %v361
        %389 = vmatprep.subr.mxu0 0.0
        %390 = vmatpush1.msra.mxu0 %v362
        %391 = vmatprep.subr.mxu0 0.0
        %392 = vmatpush1.msra.mxu0 %v363
        %393 = vmatprep.subr.mxu0 0.0
        %394 = vmatpush1.msra.mxu0 %v364
        %395 = vmatprep.subr.mxu0 0.0
        %396 = vmatpush1.msra.mxu0 %v365
        %397 = vmatprep.subr.mxu0 0.0
        %398 = vmatpush1.msra.mxu0 %v366
        %399 = vmatprep.subr.mxu0 0.0
        %400 = vmatpush1.msra.mxu0 0.0
        %401 = vmatprep.subr.mxu0 0.0
        %402 = vmatpush1.msra.mxu0 0.0
        %403 = vmatprep.subr.mxu0 0.0
        %404 = vmatpush1.msra.mxu0 0.0
        %405 = vmatprep.subr.mxu0 0.0
        %406 = vmatpush1.msra.mxu0 0.0
        %407 = vmatprep.subr.mxu0 0.0
        %408 = vmatpush1.msra.mxu0 0.0
        %409 = vmatprep.subr.mxu0 0.0
        %410 = vmatpush1.msra.mxu0 0.0
        %411 = vmatprep.subr.mxu0 0.0
        %412 = vmatpush1.msra.mxu0 0.0
        %413 = vmatprep.subr.mxu0 0.0
        %414 = vmatpush1.msra.mxu0 0.0
        %415 = vmatprep.subr.mxu0 0.0
        %416 = vmatpush1.msra.mxu0 0.0
        %417 = vmatprep.subr.mxu0 0.0
        %418 = vmatpush1.msra.mxu0 0.0
        %419 = vmatprep.subr.mxu0 0.0
        %420 = vmatpush1.msra.mxu0 0.0
        %421 = vmatprep.subr.mxu0 0.0
        %422 = vmatpush1.msra.mxu0 0.0
        %423 = vmatprep.subr.mxu0 0.0
        %424 = vmatpush1.msra.mxu0 0.0
        %425 = vmatprep.subr.mxu0 0.0
        %426 = vmatpush1.msra.mxu0 0.0
        %427 = vmatprep.subr.mxu0 0.0
        %428 = vmatpush1.msra.mxu0 0.0
        %429 = vmatprep.subr.mxu0 0.0
        %430 = vmatpush1.msra.mxu0 0.0
        %431 = vmatprep.mubr.f32.mxu0 0.0
        %432 = vmatmul.mubr.f32.gmra.mrb[0].mxu0 %v349
        %v433 = vpop.f32.mrb[0].mxu0
        %v434 = vadd.f32 0.0, %v433
        %v435 = vpop.f32.mrb[0].mxu0
        %436 = vdwg.mxu0
        %v437 = vadd.f32 %v350, %v434
        %438 = vst [vmem:[#allocation2] sm:$0xff] %v437
        %v439 = vld [vmem:[#allocation2] sm:$0xff]
        %v440 = vld [vmem:[%s4] sm:$0x1]
        %v442 = vlaneseq
        %v443 = vshrl.u32 %v442, 7
        %v444 = vsub.s32 0, %v443
        %v445 = vrot.slane %v440, %v444
        %v447 = vadd.f32 %v439, %v445
        %448 = vst [vmem:[%s249] sm:$0xff] %v447
        %p449 = scmp.lt.s32.totalorder %s18, 1
        %s450 = scalar_select %p449, %s18, 1
        %s451 = smul.addr %s450, 8
        %s452 = scalar_lea.vmem %s5, %s451
        // Predicated region
        $region49: #{mlp_pallas_prepared.1} parent=39 // pred_check
          %p453 = pneg %p146
        $region50: #{mlp_pallas_prepared.1} parent=39 // pred_check_branch
          %455 = sbr.rel (%p453) target = $region52
        $region51: #{mlp_pallas_prepared.1} parent=39 // pred_region
          _
        $region52: #{mlp_pallas_prepared.1} parent=39 // pred_fallthru
          _
      $region40: #{mlp_pallas_prepared.1} parent=5 // pred_fallthru
        _
      %p456 = scmp.le.s32.totalorder 2, %s13
      // Predicated region
      $region53: #{mlp_pallas_prepared.1} parent=5 // pred_check
        %p457 = pneg %p456
      $region54: #{mlp_pallas_prepared.1} parent=5 // pred_check_branch
        %459 = sbr.rel (%p457) target = $region56
      $region55: #{mlp_pallas_prepared.1} parent=5 // pred_region
        %s460 = ssub.s32 %s13, 2
        // Predicated region
        $region57: #{mlp_pallas_prepared.1} parent=55 // pred_check
          %p461 = pneg %p152
        $region58: #{mlp_pallas_prepared.1} parent=55 // pred_check_branch
          %463 = sbr.rel (%p461) target = $region60
        $region59: #{mlp_pallas_prepared.1} parent=55 // pred_region
          %p464 = scmp.lt.s32.totalorder %s19, 1
          %s465 = scalar_select %p464, %s19, 1
          %s466 = smul.addr %s465, 8
          %s467 = scalar_lea.vmem %s5, %s466
        $region60: #{mlp_pallas_prepared.1} parent=55 // pred_fallthru
          _
      $region56: #{mlp_pallas_prepared.1} parent=5 // pred_fallthru
        _
    $region6: #{mlp_pallas_prepared.1} parent=1 // loop_footer
      %s17 = sadd.s32 1, %s13
    $region7: #{mlp_pallas_prepared.1} parent=1 // loop_footer_branch
      %12 = sbr.rel target = $region3
    $region8: #{mlp_pallas_prepared.1} parent=1 // loop_exit
      _
    %468 = vsyncpa [#allocation4], 1
    %s469 = scalar_lea.sflag [#allocation4], 1
    %470 = vsyncpa %s469, 1
    %471 = vsyncpa [#allocation6], 1

</llo_original>
